<compile_context>
chip_gen: v5e
topology: v5e:2x2
jax: 0.10.0
libtpu: 0.0.40
codegen_flags: <defaults>
</compile_context>

<pallas_src>
import functools

import jax
import jax.numpy as jnp
from jax.experimental import pallas as pl
from jax.experimental.pallas import tpu as pltpu


def _round_up(a, m):
    return ((a + m - 1) // m) * m


def _supports_bf16_elementwise():
    """bf16 VPU/EUP exist on v6e and later; v5e and older lack them."""
    try:
        kind = jax.devices()[0].device_kind.lower()
    except Exception:  # pragma: no cover
        return False
    return not any(v in kind for v in ("v2", "v3", "v4", "v5"))


def mlp_skip_kernel(x_ref,
                    w1_ref, b1_ref,
                    w2_ref, b2_ref,
                    w3_ref, b3_ref,
                    w4_ref, b4_ref,
                    out_ref,
                    *, output_dim, out_cols, out_pad, act_dtype):
    bf16 = jnp.bfloat16
    f32 = jnp.float32

    def act(z_f32):
        # Weights/biases were pre-scaled by 0.5 in the wrapper, so
        # sigmoid(W x + b) == 0.5 * tanh(z) + 0.5 with z = (0.5 W) x + (0.5 b).
        z = z_f32.astype(act_dtype)
        return 0.5 * jnp.tanh(z) + 0.5

    x = x_ref[...].astype(bf16)

    # linear1 + sigmoid
    x1 = act(jnp.dot(x, w1_ref[...], preferred_element_type=f32) + b1_ref[...])
    # linear2 + sigmoid, skip
    x2 = act(jnp.dot(x1.astype(bf16), w2_ref[...],
                     preferred_element_type=f32) + b2_ref[...]) + x1
    # linear3 + sigmoid, skip
    x3 = act(jnp.dot(x2.astype(bf16), w3_ref[...],
                     preferred_element_type=f32) + b3_ref[...]) + x2

    # linear4 + sigmoid and the selectivity epilogue stay f32 (only out_pad lanes).
    z4 = jnp.dot(x3.astype(bf16), w4_ref[...],
                 preferred_element_type=f32) + b4_ref[...]
    x0 = 0.5 * jnp.tanh(z4) + 0.5                          # (tile_b, out_pad) f32

    # sel_X = log(clip((1 - rej_NaCl) / (1 - rej_X), min=1e-4)); exact divide.
    rej = x0[:, 0:4]                                       # NaSO4, MgCl2, NaCl, PEG
    num = 1.0 - x0[:, 2:3]                                 # 1 - rej_NaCl
    sel = jnp.log(jnp.maximum(num / (1.0 - rej), 1e-4))    # (tile_b, 4); col 2 == 0

    # Assemble one narrow lane slab and do a single store (no 128-wide writeback).
    pieces = [x0[:, :output_dim], sel[:, 0:2], sel[:, 3:4]]
    if out_pad > out_cols:
        pieces.append(jnp.zeros((x0.shape[0], out_pad - out_cols), f32))
    out_ref[...] = jnp.concatenate(pieces, axis=-1)


def mlp_skip_forward(x, params, *, tile_b=4096, bf16_elementwise=None):
    """x: (batch, input_dim) f32. Returns (batch, output_dim + 3) f32."""
    w1, b1, w2, b2, w3, b3, w4, b4 = params
    batch, input_dim = x.shape
    neurons = w1.shape[1]
    output_dim = w4.shape[1]
    assert output_dim >= 4, "selectivity post-processing needs >= 4 output columns"
    out_cols = output_dim + 3
    out_pad = _round_up(out_cols, 8)       # narrow, lane-contiguous output width

    if bf16_elementwise is None:
        bf16_elementwise = _supports_bf16_elementwise()
    act_dtype = jnp.bfloat16 if bf16_elementwise else jnp.float32

    # Zero-pad layer 4 to the (narrow) output width; pad columns are never read back.
    w4p = jnp.zeros((neurons, out_pad), jnp.float32).at[:, :output_dim].set(
        w4.astype(jnp.float32))
    b4p = jnp.zeros((1, out_pad), jnp.float32).at[:, :output_dim].set(
        jnp.reshape(b4, (1, -1)).astype(jnp.float32))

    # Fold sigmoid's 0.5 pre-scale into the resident weights/biases (one-time
    # constant fold). bf16 weights: half the resident bytes, 2x MXU rate;
    # accumulation stays f32 via preferred_element_type in the kernel.
    w1b, w2b, w3b, w4b = ((0.5 * w.astype(jnp.float32)).astype(jnp.bfloat16)
                          for w in (w1, w2, w3, w4p))
    b1f, b2f, b3f, b4f = ((0.5 * jnp.reshape(b, (1, -1)).astype(jnp.float32))
                          for b in (b1, b2, b3, b4p))

    # Batch tiling: big tiles to amortize the ~0.35 us/step grid overhead, but
    # keep >= 2 grid steps (when the batch allows) so v7x's 2 TCs both get work.
    batch8 = _round_up(batch, 8)
    tile_b = max(8, min(_round_up(tile_b, 8), batch8))
    n_steps = pl.cdiv(batch8, tile_b)
    if batch8 >= 16:
        n_steps = max(2, n_steps)
    tile_b = _round_up(pl.cdiv(batch8, n_steps), 8)
    padded_batch = tile_b * n_steps

    xp = x.astype(jnp.float32)
    if padded_batch != batch:
        xp = jnp.pad(xp, ((0, padded_batch - batch), (0, 0)))

    const = lambda i: (0, 0)   # weights/biases: same block every step -> VMEM-resident

    out = pl.pallas_call(
        functools.partial(mlp_skip_kernel, output_dim=output_dim,
                          out_cols=out_cols, out_pad=out_pad, act_dtype=act_dtype),
        out_shape=jax.ShapeDtypeStruct((padded_batch, out_pad), jnp.float32),
        grid=(n_steps,),
        in_specs=[
            pl.BlockSpec((tile_b, input_dim), lambda i: (i, 0)),   # x tile
            pl.BlockSpec((input_dim, neurons), const),             # w1
            pl.BlockSpec((1, neurons), const),                     # b1
            pl.BlockSpec((neurons, neurons), const),               # w2
            pl.BlockSpec((1, neurons), const),                     # b2
            pl.BlockSpec((neurons, neurons), const),               # w3
            pl.BlockSpec((1, neurons), const),                     # b3
            pl.BlockSpec((neurons, out_pad), const),               # w4 (narrow-padded)
            pl.BlockSpec((1, out_pad), const),                     # b4 (narrow-padded)
        ],
        out_specs=pl.BlockSpec((tile_b, out_pad), lambda i: (i, 0)),
        compiler_params=pltpu.CompilerParams(
            dimension_semantics=("parallel",)),
    )(xp, w1b, b1f, w2b, b2f, w3b, b3f, w4b, b4f)

    return out[:batch, :out_cols]


def mlp_skip_reference(x, params):
    """Pure-JAX f32 reference of the torch forward (weights already transposed)."""
    w1, b1, w2, b2, w3, b3, w4, b4 = params
    sig = jax.nn.sigmoid
    x1 = sig(x @ w1 + b1)
    x2 = sig(x1 @ w2 + b2) + x1
    x3 = sig(x2 @ w3 + b3) + x2
    x0 = sig(x3 @ w4 + b4)
    num = 1.0 - x0[:, 2:3]                     # 1 - rej_NaCl
    sel = jnp.log(jnp.maximum(num / (1.0 - x0), 1e-4))
    return jnp.concatenate([x0, sel[:, 0:1], sel[:, 1:2], sel[:, 3:4]], axis=-1)


def init_params(key, input_dim, output_dim, neurons):
    """Deterministic init mimicking nn.Linear's U(-1/sqrt(fan_in), +1/sqrt(fan_in))."""
    def linear(k, fan_in, fan_out):
        kw, kb = jax.random.split(k)
        bound = 1.0 / jnp.sqrt(fan_in)
        w = jax.random.uniform(kw, (fan_in, fan_out), jnp.float32, -bound, bound)
        b = jax.random.uniform(kb, (1, fan_out), jnp.float32, -bound, bound)
        return w, b

    k1, k2, k3, k4 = jax.random.split(key, 4)
    w1, b1 = linear(k1, input_dim, neurons)
    w2, b2 = linear(k2, neurons, neurons)
    w3, b3 = linear(k3, neurons, neurons)
    w4, b4 = linear(k4, neurons, output_dim)
    return (w1, b1, w2, b2, w3, b3, w4, b4)


if __name__ == "__main__":
    batch = 29          # non-multiple of 8 -> exercises padding + 2-step grid
    input_dim = 16
    output_dim = 4      # forward indexes columns 0..3, so output_dim must be >= 4
    neurons = 128

    key = jax.random.PRNGKey(0)
    k_params, k_x = jax.random.split(key)
    params = init_params(k_params, input_dim, output_dim, neurons)
    x = jax.random.normal(k_x, (batch, input_dim), jnp.float32)

    out = mlp_skip_forward(x, params)
    jax.block_until_ready(out)
    assert out.shape == (batch, output_dim + 3)

    ref = mlp_skip_reference(x, params)
    max_err = float(jnp.max(jnp.abs(out - ref)))
    # bf16 matmul operands (+ bf16 elementwise on v6e/v7x) -> loose tolerance.
    assert max_err < 0.1, f"kernel vs reference mismatch: max abs err = {max_err}"

    print("KERNEL_OK")
</pallas_src>

<mosaic_0001>
module attributes {stable_mosaic.version = 11 : i64} {
  func.func @mlp_skip_kernel(%arg0: i32, %arg1: memref<16x16xf32, #tpu.memory_space<vmem>>, %arg2: memref<16x128xbf16, #tpu.memory_space<vmem>>, %arg3: memref<1x128xf32, #tpu.memory_space<vmem>>, %arg4: memref<128x128xbf16, #tpu.memory_space<vmem>>, %arg5: memref<1x128xf32, #tpu.memory_space<vmem>>, %arg6: memref<128x128xbf16, #tpu.memory_space<vmem>>, %arg7: memref<1x128xf32, #tpu.memory_space<vmem>>, %arg8: memref<128x8xbf16, #tpu.memory_space<vmem>>, %arg9: memref<1x8xf32, #tpu.memory_space<vmem>>, %arg10: memref<16x8xf32, #tpu.memory_space<vmem>>) attributes {dimension_semantics = [#tpu.dimension_semantics<parallel>], iteration_bounds = array<i64: 2>, scalar_prefetch = 0 : i64, scratch_operands = 0 : i64, tpu.core_type = #tpu.core_type<tc>, window_params = [{transform_indices = @transform_0, window_bounds = array<i64: 16, 16>}, {pipeline_mode = #tpu.pipeline_mode<synchronous>, transform_indices = @transform_1, window_bounds = array<i64: 16, 128>}, {pipeline_mode = #tpu.pipeline_mode<synchronous>, transform_indices = @transform_2, window_bounds = array<i64: 1, 128>}, {pipeline_mode = #tpu.pipeline_mode<synchronous>, transform_indices = @transform_3, window_bounds = array<i64: 128, 128>}, {pipeline_mode = #tpu.pipeline_mode<synchronous>, transform_indices = @transform_4, window_bounds = array<i64: 1, 128>}, {pipeline_mode = #tpu.pipeline_mode<synchronous>, transform_indices = @transform_5, window_bounds = array<i64: 128, 128>}, {pipeline_mode = #tpu.pipeline_mode<synchronous>, transform_indices = @transform_6, window_bounds = array<i64: 1, 128>}, {pipeline_mode = #tpu.pipeline_mode<synchronous>, transform_indices = @transform_7, window_bounds = array<i64: 128, 8>}, {pipeline_mode = #tpu.pipeline_mode<synchronous>, transform_indices = @transform_8, window_bounds = array<i64: 1, 8>}, {transform_indices = @transform_9, window_bounds = array<i64: 16, 8>}]} {
    %c0 = arith.constant 0 : index
    %c0_0 = arith.constant 0 : index
    %0 = vector.load %arg1[%c0, %c0_0] : memref<16x16xf32, #tpu.memory_space<vmem>>, vector<16x16xf32>
    %1 = arith.truncf %0 : vector<16x16xf32> to vector<16x16xbf16>
    %c0_1 = arith.constant 0 : index
    %c0_2 = arith.constant 0 : index
    %2 = vector.load %arg2[%c0_1, %c0_2] : memref<16x128xbf16, #tpu.memory_space<vmem>>, vector<16x128xbf16>
    %cst = arith.constant dense<0.000000e+00> : vector<16x128xf32>
    %3 = tpu.matmul %1, %2, %cst {dimension_numbers = #tpu.dot_dimension_numbers<[1], [0], [0], [1], [0, 0, 1, 1], [], []>} : vector<16x16xbf16>, vector<16x128xbf16>, vector<16x128xf32> -> vector<16x128xf32>
    %c0_3 = arith.constant 0 : index
    %c0_4 = arith.constant 0 : index
    %4 = vector.load %arg3[%c0_3, %c0_4] : memref<1x128xf32, #tpu.memory_space<vmem>>, vector<1x128xf32>
    %5 = vector.broadcast %4 : vector<1x128xf32> to vector<16x128xf32>
    %6 = arith.addf %3, %5 : vector<16x128xf32>
    %7 = arith.truncf %6 : vector<16x128xf32> to vector<16x128xbf16>
    %8 = math.tanh %7 : vector<16x128xbf16>
    %cst_5 = arith.constant 5.000000e-01 : bf16
    %9 = vector.broadcast %cst_5 : bf16 to vector<16x128xbf16>
    %10 = arith.mulf %9, %8 : vector<16x128xbf16>
    %cst_6 = arith.constant 5.000000e-01 : bf16
    %11 = vector.broadcast %cst_6 : bf16 to vector<16x128xbf16>
    %12 = arith.addf %10, %11 : vector<16x128xbf16>
    %c0_7 = arith.constant 0 : index
    %c0_8 = arith.constant 0 : index
    %13 = vector.load %arg4[%c0_7, %c0_8] : memref<128x128xbf16, #tpu.memory_space<vmem>>, vector<128x128xbf16>
    %cst_9 = arith.constant dense<0.000000e+00> : vector<16x128xf32>
    %14 = tpu.matmul %12, %13, %cst_9 {dimension_numbers = #tpu.dot_dimension_numbers<[1], [0], [0], [1], [0, 0, 1, 1], [], []>} : vector<16x128xbf16>, vector<128x128xbf16>, vector<16x128xf32> -> vector<16x128xf32>
    %c0_10 = arith.constant 0 : index
    %c0_11 = arith.constant 0 : index
    %15 = vector.load %arg5[%c0_10, %c0_11] : memref<1x128xf32, #tpu.memory_space<vmem>>, vector<1x128xf32>
    %16 = vector.broadcast %15 : vector<1x128xf32> to vector<16x128xf32>
    %17 = arith.addf %14, %16 : vector<16x128xf32>
    %18 = arith.truncf %17 : vector<16x128xf32> to vector<16x128xbf16>
    %19 = math.tanh %18 : vector<16x128xbf16>
    %cst_12 = arith.constant 5.000000e-01 : bf16
    %20 = vector.broadcast %cst_12 : bf16 to vector<16x128xbf16>
    %21 = arith.mulf %20, %19 : vector<16x128xbf16>
    %cst_13 = arith.constant 5.000000e-01 : bf16
    %22 = vector.broadcast %cst_13 : bf16 to vector<16x128xbf16>
    %23 = arith.addf %21, %22 : vector<16x128xbf16>
    %24 = arith.addf %23, %12 : vector<16x128xbf16>
    %c0_14 = arith.constant 0 : index
    %c0_15 = arith.constant 0 : index
    %25 = vector.load %arg6[%c0_14, %c0_15] : memref<128x128xbf16, #tpu.memory_space<vmem>>, vector<128x128xbf16>
    %cst_16 = arith.constant dense<0.000000e+00> : vector<16x128xf32>
    %26 = tpu.matmul %24, %25, %cst_16 {dimension_numbers = #tpu.dot_dimension_numbers<[1], [0], [0], [1], [0, 0, 1, 1], [], []>} : vector<16x128xbf16>, vector<128x128xbf16>, vector<16x128xf32> -> vector<16x128xf32>
    %c0_17 = arith.constant 0 : index
    %c0_18 = arith.constant 0 : index
    %27 = vector.load %arg7[%c0_17, %c0_18] : memref<1x128xf32, #tpu.memory_space<vmem>>, vector<1x128xf32>
    %28 = vector.broadcast %27 : vector<1x128xf32> to vector<16x128xf32>
    %29 = arith.addf %26, %28 : vector<16x128xf32>
    %30 = arith.truncf %29 : vector<16x128xf32> to vector<16x128xbf16>
    %31 = math.tanh %30 : vector<16x128xbf16>
    %cst_19 = arith.constant 5.000000e-01 : bf16
    %32 = vector.broadcast %cst_19 : bf16 to vector<16x128xbf16>
    %33 = arith.mulf %32, %31 : vector<16x128xbf16>
    %cst_20 = arith.constant 5.000000e-01 : bf16
    %34 = vector.broadcast %cst_20 : bf16 to vector<16x128xbf16>
    %35 = arith.addf %33, %34 : vector<16x128xbf16>
    %36 = arith.addf %35, %24 : vector<16x128xbf16>
    %c0_21 = arith.constant 0 : index
    %c0_22 = arith.constant 0 : index
    %37 = vector.load %arg8[%c0_21, %c0_22] : memref<128x8xbf16, #tpu.memory_space<vmem>>, vector<128x8xbf16>
    %cst_23 = arith.constant dense<0.000000e+00> : vector<16x8xf32>
    %38 = tpu.matmul %36, %37, %cst_23 {dimension_numbers = #tpu.dot_dimension_numbers<[1], [0], [0], [1], [0, 0, 1, 1], [], []>} : vector<16x128xbf16>, vector<128x8xbf16>, vector<16x8xf32> -> vector<16x8xf32>
    %c0_24 = arith.constant 0 : index
    %c0_25 = arith.constant 0 : index
    %39 = vector.load %arg9[%c0_24, %c0_25] : memref<1x8xf32, #tpu.memory_space<vmem>>, vector<1x8xf32>
    %40 = vector.broadcast %39 : vector<1x8xf32> to vector<16x8xf32>
    %41 = arith.addf %38, %40 : vector<16x8xf32>
    %42 = math.tanh %41 : vector<16x8xf32>
    %cst_26 = arith.constant 5.000000e-01 : f32
    %43 = vector.broadcast %cst_26 : f32 to vector<16x8xf32>
    %44 = arith.mulf %43, %42 : vector<16x8xf32>
    %cst_27 = arith.constant 5.000000e-01 : f32
    %45 = vector.broadcast %cst_27 : f32 to vector<16x8xf32>
    %46 = arith.addf %44, %45 : vector<16x8xf32>
    %47 = vector.extract_strided_slice %46 {offsets = [0, 0], sizes = [16, 4], strides = [1, 1]} : vector<16x8xf32> to vector<16x4xf32>
    %48 = vector.extract_strided_slice %46 {offsets = [0, 2], sizes = [16, 1], strides = [1, 1]} : vector<16x8xf32> to vector<16x1xf32>
    %cst_28 = arith.constant 1.000000e+00 : f32
    %49 = vector.broadcast %cst_28 : f32 to vector<16x1xf32>
    %50 = arith.subf %49, %48 : vector<16x1xf32>
    %cst_29 = arith.constant 1.000000e+00 : f32
    %51 = vector.broadcast %cst_29 : f32 to vector<16x4xf32>
    %52 = arith.subf %51, %47 : vector<16x4xf32>
    %53 = vector.broadcast %50 : vector<16x1xf32> to vector<16x4xf32>
    %54 = arith.divf %53, %52 : vector<16x4xf32>
    %cst_30 = arith.constant 9.99999974E-5 : f32
    %55 = vector.broadcast %cst_30 : f32 to vector<16x4xf32>
    %56 = arith.maximumf %54, %55 : vector<16x4xf32>
    %57 = math.log %56 : vector<16x4xf32>
    %58 = vector.extract_strided_slice %46 {offsets = [0, 0], sizes = [16, 4], strides = [1, 1]} : vector<16x8xf32> to vector<16x4xf32>
    %59 = vector.extract_strided_slice %57 {offsets = [0, 0], sizes = [16, 2], strides = [1, 1]} : vector<16x4xf32> to vector<16x2xf32>
    %60 = vector.extract_strided_slice %57 {offsets = [0, 3], sizes = [16, 1], strides = [1, 1]} : vector<16x4xf32> to vector<16x1xf32>
    %cst_31 = arith.constant 0.000000e+00 : f32
    %61 = vector.broadcast %cst_31 : f32 to vector<16x1xf32>
    %62 = tpu.concatenate %58, %59, %60, %61 in 1 : vector<16x4xf32>, vector<16x2xf32>, vector<16x1xf32>, vector<16x1xf32> -> vector<16x8xf32>
    %c0_32 = arith.constant 0 : index
    %c0_33 = arith.constant 0 : index
    %63 = vector.load %arg10[%c0_32, %c0_33] : memref<16x8xf32, #tpu.memory_space<vmem>>, vector<16x8xf32>
    tpu.vector_store %arg10[%c0_32, %c0_33], %62 {strides = array<i32>} : memref<16x8xf32, #tpu.memory_space<vmem>>, vector<16x8xf32>,
    return
  }
  func.func @transform_0(%arg0: i32) -> (i32, i32) {
    %c0_i32 = arith.constant 0 : i32
    %c0_i32_0 = arith.constant 0 : i32
    return %arg0, %c0_i32 : i32, i32
  }
  func.func @transform_1(%arg0: i32) -> (i32, i32) {
    %c0_i32 = arith.constant 0 : i32
    %c0_i32_0 = arith.constant 0 : i32
    %c0_i32_1 = arith.constant 0 : i32
    return %c0_i32, %c0_i32_0 : i32, i32
  }
  func.func @transform_2(%arg0: i32) -> (i32, i32) {
    %c0_i32 = arith.constant 0 : i32
    %c0_i32_0 = arith.constant 0 : i32
    %c0_i32_1 = arith.constant 0 : i32
    return %c0_i32, %c0_i32_0 : i32, i32
  }
  func.func @transform_3(%arg0: i32) -> (i32, i32) {
    %c0_i32 = arith.constant 0 : i32
    %c0_i32_0 = arith.constant 0 : i32
    %c0_i32_1 = arith.constant 0 : i32
    return %c0_i32, %c0_i32_0 : i32, i32
  }
  func.func @transform_4(%arg0: i32) -> (i32, i32) {
    %c0_i32 = arith.constant 0 : i32
    %c0_i32_0 = arith.constant 0 : i32
    %c0_i32_1 = arith.constant 0 : i32
    return %c0_i32, %c0_i32_0 : i32, i32
  }
  func.func @transform_5(%arg0: i32) -> (i32, i32) {
    %c0_i32 = arith.constant 0 : i32
    %c0_i32_0 = arith.constant 0 : i32
    %c0_i32_1 = arith.constant 0 : i32
    return %c0_i32, %c0_i32_0 : i32, i32
  }
  func.func @transform_6(%arg0: i32) -> (i32, i32) {
    %c0_i32 = arith.constant 0 : i32
    %c0_i32_0 = arith.constant 0 : i32
    %c0_i32_1 = arith.constant 0 : i32
    return %c0_i32, %c0_i32_0 : i32, i32
  }
  func.func @transform_7(%arg0: i32) -> (i32, i32) {
    %c0_i32 = arith.constant 0 : i32
    %c0_i32_0 = arith.constant 0 : i32
    %c0_i32_1 = arith.constant 0 : i32
    return %c0_i32, %c0_i32_0 : i32, i32
  }
  func.func @transform_8(%arg0: i32) -> (i32, i32) {
    %c0_i32 = arith.constant 0 : i32
    %c0_i32_0 = arith.constant 0 : i32
    %c0_i32_1 = arith.constant 0 : i32
    return %c0_i32, %c0_i32_0 : i32, i32
  }
  func.func @transform_9(%arg0: i32) -> (i32, i32) {
    %c0_i32 = arith.constant 0 : i32
    %c0_i32_0 = arith.constant 0 : i32
    return %arg0, %c0_i32 : i32, i32
  }
}

</mosaic_0001>

<llo_original>
// kernel: tpu_custom_call.1
$region0: #{tpu_custom_call.1}
  #allocation0 [shape = 'u32[]', space=smem, size = 0x4, offset = 0x4, fixed_abs, tag = 'smem constant byte address 0x4 - core index']
  #allocation1 [shape = 'u32[72,128]{1,0:T(1,128)}', space=vmem, size = 0x9000, scoped, tag = 'internal scratch']
  %s0 = inlined_call_operand.vmem [shape: f32[32,16], index: 0, kind: input, shape index: {}]
  %s1 = inlined_call_operand.vmem [shape: bf16[16,128], index: 1, kind: input, shape index: {}]
  %s2 = inlined_call_operand.vmem [shape: f32[1,128], index: 2, kind: input, shape index: {}]
  %s3 = inlined_call_operand.vmem [shape: bf16[128,128], index: 3, kind: input, shape index: {}]
  %s4 = inlined_call_operand.vmem [shape: f32[1,128], index: 4, kind: input, shape index: {}]
  %s5 = inlined_call_operand.hbm [shape: bf16[128,128], index: 5, kind: input, shape index: {}]
  %s6 = inlined_call_operand.vmem [shape: f32[1,128], index: 6, kind: input, shape index: {}]
  %s7 = inlined_call_operand.vmem [shape: bf16[128,8], index: 7, kind: input, shape index: {}]
  %s8 = inlined_call_operand.vmem [shape: f32[1,8], index: 8, kind: input, shape index: {}]
  %s9 = inlined_call_operand.vmem [shape: f32[32,8], index: 9, kind: output, shape index: {}]
  %s10 = sld [smem:[#allocation0]]
  $region73: #{tpu_custom_call.1} parent=0
    _
  %s12 = ssub.s32 1, %s10
  %s13 = scalar_select 0, %s12, %s10
  $region1: #{tpu_custom_call.1} parent=0
    #allocation2 [shape = 'u8[32768]{0}', space=vmem, size = 0x8000, scoped, tag = 'input window, operand 5, single buffered']
    #allocation3 [shape = 's32[2]{0}', space=sflag, size = 0x8, scoped, tag = 'scoped memory for tpu_custom_call.1']
    %14 = vsyncpa [#allocation3], 0
    loop: start=0, step=1, limit=4
    $region2: #{tpu_custom_call.1} parent=1 // loop_pre_header
      _
    $region3: #{tpu_custom_call.1} parent=1 // loop_header
      %s16 = sphi 0, %s20
      %p17 = scmp.ge.s32.totalorder %s16, 4
      %s26 = sphi 0, %s28
      %s29 = sphi 0, %s26
      %s30 = sphi 0, %s29
      %s46 = sphi 0, %s30
      %s50 = sphi 0, %s50
      %s52 = sphi 0, %s50
      %s53 = sphi 0, %s52
      %s67 = sphi 0, %s53
      %s71 = sphi 0, %s71
      %s73 = sphi 0, %s71
      %s74 = sphi 0, %s73
      %s88 = sphi 0, %s74
      %s92 = sphi 0, %s92
      %s94 = sphi 0, %s92
      %s95 = sphi 0, %s94
      %s109 = sphi 0, %s95
      %s113 = sphi 0, %s113
      %s115 = sphi 0, %s113
      %s116 = sphi 0, %s115
      %s130 = sphi 0, %s116
      %s134 = sphi 0, %s134
      %s136 = sphi 0, %s134
      %s137 = sphi 0, %s136
      %s151 = sphi 0, %s137
      %s155 = sphi 0, %s155
      %s157 = sphi 0, %s155
      %s158 = sphi 0, %s157
      %s172 = sphi 0, %s158
      %s176 = sphi 0, %s176
      %s178 = sphi 0, %s176
      %s179 = sphi 0, %s178
      %s193 = sphi 0, %s179
      %s197 = sphi 0, %s197
      %s199 = sphi 0, %s197
      %s200 = sphi 0, %s199
      %s214 = sphi 0, %s200
      %s220 = sphi 0, %s222
      %s223 = sphi 0, %s220
      %s224 = sphi 0, %s223
      %s240 = sphi 0, %s224
    $region4: #{tpu_custom_call.1} parent=1 // loop_header_branch
      %19 = sbr.rel (%p17) target = $region8
    $region5: #{tpu_custom_call.1} parent=1 // loop_body
      %s21 = ssub.s32 %s16, 1
      %s22 = ssub.s32 %s16, 2
      %s23 = sadd.s32 %s16, 1
      %s24 = ssub.s32 %s16, %s23
      %p25 = scmp.eq.s32.totalorder %s24, 0
      %s27 = sadd.s32 %s26, 1
      %s28 = scalar_select %p25, %s26, %s27
      %p31 = pneg %p25
      %p32 = scmp.eq.s32.totalorder %s16, 1
      %p33 = por %p31, %p32
      %p34 = scmp.ne.s32.totalorder %s26, %s29
      %p35 = scmp.eq.s32.totalorder %s16, 0
      %p36 = por %p34, %p35
      %p37 = scmp.ne.s32.totalorder %s26, %s29
      %p38 = scmp.eq.s32.totalorder %s21, 1
      %p39 = por %p37, %p38
      %p40 = scmp.ne.s32.totalorder %s29, %s30
      %p41 = scmp.eq.s32.totalorder %s21, 0
      %p42 = por %p40, %p41
      %p43 = scmp.ne.s32.totalorder %s29, %s30
      %p44 = scmp.eq.s32.totalorder %s22, 1
      %p45 = por %p43, %p44
      %p47 = scmp.ne.s32.totalorder %s30, %s46
      %p48 = scmp.eq.s32.totalorder %s22, 0
      %p49 = por %p47, %p48
      %s51 = sadd.s32 %s50, 1
      %p54 = scmp.eq.s32.totalorder %s16, 1
      %p55 = scmp.ne.s32.totalorder %s50, %s52
      %p56 = scmp.eq.s32.totalorder %s16, 0
      %p57 = por %p55, %p56
      %p58 = scmp.ne.s32.totalorder %s50, %s52
      %p59 = scmp.eq.s32.totalorder %s21, 1
      %p60 = por %p58, %p59
      %p61 = scmp.ne.s32.totalorder %s52, %s53
      %p62 = scmp.eq.s32.totalorder %s21, 0
      %p63 = por %p61, %p62
      %p64 = scmp.ne.s32.totalorder %s52, %s53
      %p65 = scmp.eq.s32.totalorder %s22, 1
      %p66 = por %p64, %p65
      %p68 = scmp.ne.s32.totalorder %s53, %s67
      %p69 = scmp.eq.s32.totalorder %s22, 0
      %p70 = por %p68, %p69
      %s72 = sadd.s32 %s71, 1
      %p75 = scmp.eq.s32.totalorder %s16, 1
      %p76 = scmp.ne.s32.totalorder %s71, %s73
      %p77 = scmp.eq.s32.totalorder %s16, 0
      %p78 = por %p76, %p77
      %p79 = scmp.ne.s32.totalorder %s71, %s73
      %p80 = scmp.eq.s32.totalorder %s21, 1
      %p81 = por %p79, %p80
      %p82 = scmp.ne.s32.totalorder %s73, %s74
      %p83 = scmp.eq.s32.totalorder %s21, 0
      %p84 = por %p82, %p83
      %p85 = scmp.ne.s32.totalorder %s73, %s74
      %p86 = scmp.eq.s32.totalorder %s22, 1
      %p87 = por %p85, %p86
      %p89 = scmp.ne.s32.totalorder %s74, %s88
      %p90 = scmp.eq.s32.totalorder %s22, 0
      %p91 = por %p89, %p90
      %s93 = sadd.s32 %s92, 1
      %p96 = scmp.eq.s32.totalorder %s16, 1
      %p97 = scmp.ne.s32.totalorder %s92, %s94
      %p98 = scmp.eq.s32.totalorder %s16, 0
      %p99 = por %p97, %p98
      %p100 = scmp.ne.s32.totalorder %s92, %s94
      %p101 = scmp.eq.s32.totalorder %s21, 1
      %p102 = por %p100, %p101
      %p103 = scmp.ne.s32.totalorder %s94, %s95
      %p104 = scmp.eq.s32.totalorder %s21, 0
      %p105 = por %p103, %p104
      %p106 = scmp.ne.s32.totalorder %s94, %s95
      %p107 = scmp.eq.s32.totalorder %s22, 1
      %p108 = por %p106, %p107
      %p110 = scmp.ne.s32.totalorder %s95, %s109
      %p111 = scmp.eq.s32.totalorder %s22, 0
      %p112 = por %p110, %p111
      %s114 = sadd.s32 %s113, 1
      %p117 = scmp.eq.s32.totalorder %s16, 1
      %p118 = scmp.ne.s32.totalorder %s113, %s115
      %p119 = scmp.eq.s32.totalorder %s16, 0
      %p120 = por %p118, %p119
      %p121 = scmp.ne.s32.totalorder %s113, %s115
      %p122 = scmp.eq.s32.totalorder %s21, 1
      %p123 = por %p121, %p122
      %p124 = scmp.ne.s32.totalorder %s115, %s116
      %p125 = scmp.eq.s32.totalorder %s21, 0
      %p126 = por %p124, %p125
      %p127 = scmp.ne.s32.totalorder %s115, %s116
      %p128 = scmp.eq.s32.totalorder %s22, 1
      %p129 = por %p127, %p128
      %p131 = scmp.ne.s32.totalorder %s116, %s130
      %p132 = scmp.eq.s32.totalorder %s22, 0
      %p133 = por %p131, %p132
      %s135 = sadd.s32 %s134, 1
      %p138 = scmp.eq.s32.totalorder %s16, 1
      %p139 = scmp.ne.s32.totalorder %s134, %s136
      %p140 = scmp.eq.s32.totalorder %s16, 0
      %p141 = por %p139, %p140
      %p142 = scmp.ne.s32.totalorder %s134, %s136
      %p143 = scmp.eq.s32.totalorder %s21, 1
      %p144 = por %p142, %p143
      %p145 = scmp.ne.s32.totalorder %s136, %s137
      %p146 = scmp.eq.s32.totalorder %s21, 0
      %p147 = por %p145, %p146
      %p148 = scmp.ne.s32.totalorder %s136, %s137
      %p149 = scmp.eq.s32.totalorder %s22, 1
      %p150 = por %p148, %p149
      %p152 = scmp.ne.s32.totalorder %s137, %s151
      %p153 = scmp.eq.s32.totalorder %s22, 0
      %p154 = por %p152, %p153
      %s156 = sadd.s32 %s155, 1
      %p159 = scmp.eq.s32.totalorder %s16, 1
      %p160 = scmp.ne.s32.totalorder %s155, %s157
      %p161 = scmp.eq.s32.totalorder %s16, 0
      %p162 = por %p160, %p161
      %p163 = scmp.ne.s32.totalorder %s155, %s157
      %p164 = scmp.eq.s32.totalorder %s21, 1
      %p165 = por %p163, %p164
      %p166 = scmp.ne.s32.totalorder %s157, %s158
      %p167 = scmp.eq.s32.totalorder %s21, 0
      %p168 = por %p166, %p167
      %p169 = scmp.ne.s32.totalorder %s157, %s158
      %p170 = scmp.eq.s32.totalorder %s22, 1
      %p171 = por %p169, %p170
      %p173 = scmp.ne.s32.totalorder %s158, %s172
      %p174 = scmp.eq.s32.totalorder %s22, 0
      %p175 = por %p173, %p174
      %s177 = sadd.s32 %s176, 1
      %p180 = scmp.eq.s32.totalorder %s16, 1
      %p181 = scmp.ne.s32.totalorder %s176, %s178
      %p182 = scmp.eq.s32.totalorder %s16, 0
      %p183 = por %p181, %p182
      %p184 = scmp.ne.s32.totalorder %s176, %s178
      %p185 = scmp.eq.s32.totalorder %s21, 1
      %p186 = por %p184, %p185
      %p187 = scmp.ne.s32.totalorder %s178, %s179
      %p188 = scmp.eq.s32.totalorder %s21, 0
      %p189 = por %p187, %p188
      %p190 = scmp.ne.s32.totalorder %s178, %s179
      %p191 = scmp.eq.s32.totalorder %s22, 1
      %p192 = por %p190, %p191
      %p194 = scmp.ne.s32.totalorder %s179, %s193
      %p195 = scmp.eq.s32.totalorder %s22, 0
      %p196 = por %p194, %p195
      %s198 = sadd.s32 %s197, 1
      %p201 = scmp.eq.s32.totalorder %s16, 1
      %p202 = scmp.ne.s32.totalorder %s197, %s199
      %p203 = scmp.eq.s32.totalorder %s16, 0
      %p204 = por %p202, %p203
      %p205 = scmp.ne.s32.totalorder %s197, %s199
      %p206 = scmp.eq.s32.totalorder %s21, 1
      %p207 = por %p205, %p206
      %p208 = scmp.ne.s32.totalorder %s199, %s200
      %p209 = scmp.eq.s32.totalorder %s21, 0
      %p210 = por %p208, %p209
      %p211 = scmp.ne.s32.totalorder %s199, %s200
      %p212 = scmp.eq.s32.totalorder %s22, 1
      %p213 = por %p211, %p212
      %p215 = scmp.ne.s32.totalorder %s200, %s214
      %p216 = scmp.eq.s32.totalorder %s22, 0
      %p217 = por %p215, %p216
      %s218 = ssub.s32 %s16, %s23
      %p219 = scmp.eq.s32.totalorder %s218, 0
      %s221 = sadd.s32 %s220, 1
      %s222 = scalar_select %p219, %s220, %s221
      %p225 = pneg %p219
      %p226 = scmp.eq.s32.totalorder %s16, 1
      %p227 = por %p225, %p226
      %p228 = scmp.ne.s32.totalorder %s220, %s223
      %p229 = scmp.eq.s32.totalorder %s16, 0
      %p230 = por %p228, %p229
      %p231 = scmp.ne.s32.totalorder %s220, %s223
      %p232 = scmp.eq.s32.totalorder %s21, 1
      %p233 = por %p231, %p232
      %p234 = scmp.ne.s32.totalorder %s223, %s224
      %p235 = scmp.eq.s32.totalorder %s21, 0
      %p236 = por %p234, %p235
      %p237 = scmp.ne.s32.totalorder %s223, %s224
      %p238 = scmp.eq.s32.totalorder %s22, 1
      %p239 = por %p237, %p238
      %p241 = scmp.ne.s32.totalorder %s224, %s240
      %p242 = scmp.eq.s32.totalorder %s22, 0
      %p243 = por %p241, %p242
      %p244 = scmp.le.s32.totalorder 1, %s16
      %p245 = scmp.lt.s32.totalorder %s16, 3
      %p246 = pnand %p244, %p245
      %p247 = pneg %p246
      // Predicated region
      $region9: #{tpu_custom_call.1} parent=5 // pred_check
        _
      $region10: #{tpu_custom_call.1} parent=5 // pred_check_branch
        %249 = sbr.rel (%p246) target = $region12
      $region11: #{tpu_custom_call.1} parent=5 // pred_region
        %s250 = ssub.s32 %s16, 1
        // Predicated region
        $region13: #{tpu_custom_call.1} parent=11 // pred_check
          %p251 = pneg %p63
        $region14: #{tpu_custom_call.1} parent=11 // pred_check_branch
          %253 = sbr.rel (%p251) target = $region16
        $region15: #{tpu_custom_call.1} parent=11 // pred_region
          _
        $region16: #{tpu_custom_call.1} parent=11 // pred_fallthru
          _
        // Predicated region
        $region17: #{tpu_custom_call.1} parent=11 // pred_check
          %p254 = pneg %p84
        $region18: #{tpu_custom_call.1} parent=11 // pred_check_branch
          %256 = sbr.rel (%p254) target = $region20
        $region19: #{tpu_custom_call.1} parent=11 // pred_region
          _
        $region20: #{tpu_custom_call.1} parent=11 // pred_fallthru
          _
        // Predicated region
        $region21: #{tpu_custom_call.1} parent=11 // pred_check
          %p257 = pneg %p105
        $region22: #{tpu_custom_call.1} parent=11 // pred_check_branch
          %259 = sbr.rel (%p257) target = $region24
        $region23: #{tpu_custom_call.1} parent=11 // pred_region
          _
        $region24: #{tpu_custom_call.1} parent=11 // pred_fallthru
          _
        // Predicated region
        $region25: #{tpu_custom_call.1} parent=11 // pred_check
          %p260 = pneg %p126
        $region26: #{tpu_custom_call.1} parent=11 // pred_check_branch
          %262 = sbr.rel (%p260) target = $region28
        $region27: #{tpu_custom_call.1} parent=11 // pred_region
          _
        $region28: #{tpu_custom_call.1} parent=11 // pred_fallthru
          _
        // Predicated region
        $region29: #{tpu_custom_call.1} parent=11 // pred_check
          %p263 = pneg %p147
        $region30: #{tpu_custom_call.1} parent=11 // pred_check_branch
          %265 = sbr.rel (%p263) target = $region32
        $region31: #{tpu_custom_call.1} parent=11 // pred_region
          %267 = vsyncadd [#allocation3], 0
          %s268 = sshll.u32 %s5, 4
          %s269 = int_to_ptr.hbm [resolvable:$true] %s268
          %s270 = sshll.u32 [#allocation2], 4
          %s271 = int_to_ptr.vmem [resolvable:$true] %s270
          %276 = dma.hbm_to_vmem [thread:$0]  %s269, 1024, %s271, [#allocation3], 64, 64, 4
        $region32: #{tpu_custom_call.1} parent=11 // pred_fallthru
          _
        // Predicated region
        $region33: #{tpu_custom_call.1} parent=11 // pred_check
          %p277 = pneg %p168
        $region34: #{tpu_custom_call.1} parent=11 // pred_check_branch
          %279 = sbr.rel (%p277) target = $region36
        $region35: #{tpu_custom_call.1} parent=11 // pred_region
          _
        $region36: #{tpu_custom_call.1} parent=11 // pred_fallthru
          _
        // Predicated region
        $region37: #{tpu_custom_call.1} parent=11 // pred_check
          %p280 = pneg %p189
        $region38: #{tpu_custom_call.1} parent=11 // pred_check_branch
          %282 = sbr.rel (%p280) target = $region40
        $region39: #{tpu_custom_call.1} parent=11 // pred_region
          _
        $region40: #{tpu_custom_call.1} parent=11 // pred_fallthru
          _
        // Predicated region
        $region41: #{tpu_custom_call.1} parent=11 // pred_check
          %p283 = pneg %p210
        $region42: #{tpu_custom_call.1} parent=11 // pred_check_branch
          %285 = sbr.rel (%p283) target = $region44
        $region43: #{tpu_custom_call.1} parent=11 // pred_region
          _
        $region44: #{tpu_custom_call.1} parent=11 // pred_fallthru
          _
      $region12: #{tpu_custom_call.1} parent=5 // pred_fallthru
        _
      %p286 = scmp.lt.s32.totalorder %s16, 2
      // Predicated region
      $region45: #{tpu_custom_call.1} parent=5 // pred_check
        %p287 = pneg %p286
      $region46: #{tpu_custom_call.1} parent=5 // pred_check_branch
        %289 = sbr.rel (%p287) target = $region48
      $region47: #{tpu_custom_call.1} parent=5 // pred_region
        // Predicated region
        $region49: #{tpu_custom_call.1} parent=47 // pred_check
          %p290 = pneg %p36
        $region50: #{tpu_custom_call.1} parent=47 // pred_check_branch
          %292 = sbr.rel (%p290) target = $region52
        $region51: #{tpu_custom_call.1} parent=47 // pred_region
          %s293 = smul.u32 2, %s16
          %p294 = scmp.lt.s32.totalorder %s293, 3
          %s295 = scalar_select %p294, %s293, 3
          %s296 = smul.addr %s295, 8
          %s297 = scalar_lea.vmem %s0, %s296
          %s298 = smul.u32 2, %s16
        $region52: #{tpu_custom_call.1} parent=47 // pred_fallthru
          _
      $region48: #{tpu_custom_call.1} parent=5 // pred_fallthru
        _
      %p299 = scmp.le.s32.totalorder 1, %s16
      %p300 = scmp.lt.s32.totalorder %s16, 3
      %p301 = pnand %p299, %p300
      %p302 = pneg %p301
      // Predicated region
      $region53: #{tpu_custom_call.1} parent=5 // pred_check
        _
      $region54: #{tpu_custom_call.1} parent=5 // pred_check_branch
        %304 = sbr.rel (%p301) target = $region56
      $region55: #{tpu_custom_call.1} parent=5 // pred_region
        %s305 = ssub.s32 %s16, 1
        // Predicated region
        $region57: #{tpu_custom_call.1} parent=55 // pred_check
          %p306 = pneg %p147
        $region58: #{tpu_custom_call.1} parent=55 // pred_check_branch
          %308 = sbr.rel (%p306) target = $region60
        $region59: #{tpu_custom_call.1} parent=55 // pred_region
          %310 = dma.done [#allocation3], 1024
        $region60: #{tpu_custom_call.1} parent=55 // pred_fallthru
          _
        %s311 = smul.u32 2, %s21
        %p312 = scmp.lt.s32.totalorder %s311, 3
        %s313 = scalar_select %p312, %s311, 3
        %s314 = smul.addr %s313, 8
        %s315 = scalar_lea.vmem %s0, %s314
        %p316 = pneg %p42
        %p317 = pneg %p39
        %p318 = pneg %p63
        %p319 = pneg %p60
        %p320 = pneg %p84
        %p321 = pneg %p81
        %p322 = pneg %p105
        %p323 = pneg %p102
        %p324 = pneg %p126
        %p325 = pneg %p123
        %p326 = pneg %p147
        %p327 = pneg %p144
        %p328 = pneg %p168
        %p329 = pneg %p165
        %p330 = pneg %p189
        %p331 = pneg %p186
        %p332 = pneg %p210
        %p333 = pneg %p207
        %p334 = pneg %p236
        %p335 = pneg %p233
        %s336 = smul.u32 2, %s21
        %p337 = scmp.lt.s32.totalorder %s336, 3
        %s338 = scalar_select %p337, %s336, 3
        %s339 = smul.addr %s338, 8
        %s340 = scalar_lea.vmem %s9, %s339
        %s341 = smul.u32 2, %s21
        %p342 = scmp.lt.s32.totalorder %s341, 3
        %s343 = scalar_select %p342, %s341, 3
        %s344 = smul.addr %s343, 8
        %s345 = scalar_lea.vmem %s0, %s344
        %s346 = smul.u32 2, %s21
        %s347 = smul.u32 2, %s21
        %p348 = scmp.lt.s32.totalorder %s347, 3
        %s349 = scalar_select %p348, %s347, 3
        %s350 = smul.addr %s349, 8
        %s351 = scalar_lea.vmem %s9, %s350
        %s352 = smul.u32 2, %s21
        %v354 = vld [vmem:[%s345] sm:$0xff]
        %v355 = vld [vmem:[%s345 + $0x8] sm:$0xff]
        %v356 = vpack.c.bf16 %v355, %v354
        %v357 = vld [vmem:[%s1] sm:$0xf]
        %v358 = vld [vmem:[%s1 + $0x4] sm:$0xf]
        %v359 = vld [vmem:[%s2] sm:$0x1]
        %v361 = vperm.slane %v359, 0
        %v365 = vunpack.c.l.b16 %v357
        %v366 = vunpack.c.l.b16 %v358
        %v367 = vpack.c.b16 %v366, %v365
        %vm369 = vcmask 130048
        %v371 = vsel %vm369, %v356, 0
        %373 = vmatpush.bf16.msra.mxu0 0
        %374 = vmatpush.bf16.msra.mxu0 0
        %375 = vmatpush.bf16.msra.mxu0 0
        %376 = vmatpush.bf16.msra.mxu0 0
        %377 = vmatpush.bf16.msra.mxu0 0
        %378 = vmatpush.bf16.msra.mxu0 0
        %379 = vmatpush.bf16.msra.mxu0 0
        %380 = vmatpush.bf16.msra.mxu0 %v367
        %381 = vmatmul.bf16.gmra.mxu0 %v371
        %v382 = vpop.f32.mrf.mxu0
        %v383 = vadd.f32 %v361, %v382
        %v384 = vpop.f32.mrf.mxu0
        %v385 = vadd.f32 %v361, %v384
        %386 = vdwg.mxu0
        %v387 = vpack.c.bf16 %v383, %v383
        %v388 = vpack.c.bf16 %v385, %v385
        %v389 = vunpack.c.l.bf16 %v387
        %v390 = vunpack.c.l.bf16 %v388
        %v391 = vtanh.pop %v389
        %v392 = vtanh.pop %v390
        %v393 = vpack.c.bf16 %v391, %v391
        %v394 = vpack.c.bf16 %v392, %v392
        %v395 = vunpack.c.l.bf16 %v393
        %v396 = vunpack.c.l.bf16 %v394
        %v397 = vmul.f32 %v395, 0.5
        %v398 = vmul.f32 %v396, 0.5
        %v399 = vpack.c.bf16 %v397, %v397
        %v400 = vpack.c.bf16 %v398, %v398
        %v401 = vunpack.c.l.bf16 %v399
        %v402 = vunpack.c.l.bf16 %v400
        %v403 = vadd.f32 %v401, 0.5
        %v404 = vadd.f32 %v402, 0.5
        %v405 = vpack.c.bf16 %v403, %v403
        %v406 = vpack.c.bf16 %v404, %v404
        %v407 = vld [vmem:[%s3] sm:$0xf]
        %v408 = vld [vmem:[%s3 + $0x4] sm:$0xf]
        %v409 = vld [vmem:[%s3 + $0x8] sm:$0xf]
        %v410 = vld [vmem:[%s3 + $0xc] sm:$0xf]
        %v411 = vld [vmem:[%s3 + $0x10] sm:$0xf]
        %v412 = vld [vmem:[%s3 + $0x14] sm:$0xf]
        %v413 = vld [vmem:[%s3 + $0x18] sm:$0xf]
        %v414 = vld [vmem:[%s3 + $0x1c] sm:$0xf]
        %v415 = vld [vmem:[%s3 + $0x20] sm:$0xf]
        %v416 = vld [vmem:[%s3 + $0x24] sm:$0xf]
        %v417 = vld [vmem:[%s3 + $0x28] sm:$0xf]
        %v418 = vld [vmem:[%s3 + $0x2c] sm:$0xf]
        %v419 = vld [vmem:[%s3 + $0x30] sm:$0xf]
        %v420 = vld [vmem:[%s3 + $0x34] sm:$0xf]
        %v421 = vld [vmem:[%s3 + $0x38] sm:$0xf]
        %v422 = vld [vmem:[%s3 + $0x3c] sm:$0xf]
        %v423 = vld [vmem:[%s4] sm:$0x1]
        %v425 = vperm.slane %v423, 0
        %v429 = vunpack.c.l.b16 %v405
        %v430 = vunpack.c.l.b16 %v406
        %v431 = vpack.c.b16 %v430, %v429
        %v449 = vunpack.c.l.b16 %v407
        %v450 = vunpack.c.l.b16 %v408
        %v451 = vunpack.c.l.b16 %v409
        %v452 = vunpack.c.l.b16 %v410
        %v453 = vunpack.c.l.b16 %v411
        %v454 = vunpack.c.l.b16 %v412
        %v455 = vunpack.c.l.b16 %v413
        %v456 = vunpack.c.l.b16 %v414
        %v457 = vunpack.c.l.b16 %v415
        %v458 = vunpack.c.l.b16 %v416
        %v459 = vunpack.c.l.b16 %v417
        %v460 = vunpack.c.l.b16 %v418
        %v461 = vunpack.c.l.b16 %v419
        %v462 = vunpack.c.l.b16 %v420
        %v463 = vunpack.c.l.b16 %v421
        %v464 = vunpack.c.l.b16 %v422
        %v465 = vpack.c.b16 %v450, %v449
        %v466 = vpack.c.b16 %v452, %v451
        %v467 = vpack.c.b16 %v454, %v453
        %v468 = vpack.c.b16 %v456, %v455
        %v469 = vpack.c.b16 %v458, %v457
        %v470 = vpack.c.b16 %v460, %v459
        %v471 = vpack.c.b16 %v462, %v461
        %v472 = vpack.c.b16 %v464, %v463
        %481 = vmatpush.bf16.msra.mxu0 %v472
        %482 = vmatpush.bf16.msra.mxu0 %v471
        %483 = vmatpush.bf16.msra.mxu0 %v470
        %484 = vmatpush.bf16.msra.mxu0 %v469
        %485 = vmatpush.bf16.msra.mxu0 %v468
        %486 = vmatpush.bf16.msra.mxu0 %v467
        %487 = vmatpush.bf16.msra.mxu0 %v466
        %488 = vmatpush.bf16.msra.mxu0 %v465
        %489 = vmatmul.bf16.gmra.mxu0 %v431
        %v490 = vpop.f32.mrf.mxu0
        %v491 = vadd.f32 %v425, %v490
        %v492 = vpop.f32.mrf.mxu0
        %v493 = vadd.f32 %v425, %v492
        %494 = vdwg.mxu0
        %v495 = vpack.c.bf16 %v491, %v491
        %v496 = vpack.c.bf16 %v493, %v493
        %v497 = vunpack.c.l.bf16 %v495
        %v498 = vunpack.c.l.bf16 %v496
        %v499 = vtanh.pop %v497
        %v500 = vtanh.pop %v498
        %v501 = vpack.c.bf16 %v499, %v499
        %v502 = vpack.c.bf16 %v500, %v500
        %v503 = vunpack.c.l.bf16 %v501
        %v504 = vunpack.c.l.bf16 %v502
        %v505 = vmul.f32 %v503, 0.5
        %v506 = vmul.f32 %v504, 0.5
        %v507 = vpack.c.bf16 %v505, %v505
        %v508 = vpack.c.bf16 %v506, %v506
        %v509 = vunpack.c.l.bf16 %v507
        %v510 = vunpack.c.l.bf16 %v508
        %v511 = vadd.f32 %v509, 0.5
        %v512 = vadd.f32 %v510, 0.5
        %v513 = vpack.c.bf16 %v511, %v511
        %v514 = vpack.c.bf16 %v512, %v512
        %v515 = vunpack.c.l.bf16 %v513
        %v516 = vunpack.c.l.bf16 %v514
        %v517 = vunpack.c.l.bf16 %v405
        %v518 = vunpack.c.l.bf16 %v406
        %v519 = vadd.f32 %v515, %v517
        %v520 = vadd.f32 %v516, %v518
        %v521 = vpack.c.bf16 %v519, %v519
        %v522 = vpack.c.bf16 %v520, %v520
        %v523 = vld [vmem:[#allocation2] sm:$0xf]
        %v524 = vld [vmem:[#allocation2 + $0x4] sm:$0xf]
        %v525 = vld [vmem:[#allocation2 + $0x8] sm:$0xf]
        %v526 = vld [vmem:[#allocation2 + $0xc] sm:$0xf]
        %v527 = vld [vmem:[#allocation2 + $0x10] sm:$0xf]
        %v528 = vld [vmem:[#allocation2 + $0x14] sm:$0xf]
        %v529 = vld [vmem:[#allocation2 + $0x18] sm:$0xf]
        %v530 = vld [vmem:[#allocation2 + $0x1c] sm:$0xf]
        %v531 = vld [vmem:[#allocation2 + $0x20] sm:$0xf]
        %v532 = vld [vmem:[#allocation2 + $0x24] sm:$0xf]
        %v533 = vld [vmem:[#allocation2 + $0x28] sm:$0xf]
        %v534 = vld [vmem:[#allocation2 + $0x2c] sm:$0xf]
        %v535 = vld [vmem:[#allocation2 + $0x30] sm:$0xf]
        %v536 = vld [vmem:[#allocation2 + $0x34] sm:$0xf]
        %v537 = vld [vmem:[#allocation2 + $0x38] sm:$0xf]
        %v538 = vld [vmem:[#allocation2 + $0x3c] sm:$0xf]
        %v539 = vld [vmem:[%s6] sm:$0x1]
        %v541 = vperm.slane %v539, 0
        %v545 = vunpack.c.l.b16 %v521
        %v546 = vunpack.c.l.b16 %v522
        %v547 = vpack.c.b16 %v546, %v545
        %v565 = vunpack.c.l.b16 %v523
        %v566 = vunpack.c.l.b16 %v524
        %v567 = vunpack.c.l.b16 %v525
        %v568 = vunpack.c.l.b16 %v526
        %v569 = vunpack.c.l.b16 %v527
        %v570 = vunpack.c.l.b16 %v528
        %v571 = vunpack.c.l.b16 %v529
        %v572 = vunpack.c.l.b16 %v530
        %v573 = vunpack.c.l.b16 %v531
        %v574 = vunpack.c.l.b16 %v532
        %v575 = vunpack.c.l.b16 %v533
        %v576 = vunpack.c.l.b16 %v534
        %v577 = vunpack.c.l.b16 %v535
        %v578 = vunpack.c.l.b16 %v536
        %v579 = vunpack.c.l.b16 %v537
        %v580 = vunpack.c.l.b16 %v538
        %v581 = vpack.c.b16 %v566, %v565
        %v582 = vpack.c.b16 %v568, %v567
        %v583 = vpack.c.b16 %v570, %v569
        %v584 = vpack.c.b16 %v572, %v571
        %v585 = vpack.c.b16 %v574, %v573
        %v586 = vpack.c.b16 %v576, %v575
        %v587 = vpack.c.b16 %v578, %v577
        %v588 = vpack.c.b16 %v580, %v579
        %597 = vmatpush.bf16.msra.mxu0 %v588
        %598 = vmatpush.bf16.msra.mxu0 %v587
        %599 = vmatpush.bf16.msra.mxu0 %v586
        %600 = vmatpush.bf16.msra.mxu0 %v585
        %601 = vmatpush.bf16.msra.mxu0 %v584
        %602 = vmatpush.bf16.msra.mxu0 %v583
        %603 = vmatpush.bf16.msra.mxu0 %v582
        %604 = vmatpush.bf16.msra.mxu0 %v581
        %605 = vmatmul.bf16.gmra.mxu0 %v547
        %v606 = vpop.f32.mrf.mxu0
        %v607 = vadd.f32 %v541, %v606
        %v608 = vpop.f32.mrf.mxu0
        %v609 = vadd.f32 %v541, %v608
        %610 = vdwg.mxu0
        %v611 = vpack.c.bf16 %v607, %v607
        %v612 = vpack.c.bf16 %v609, %v609
        %v613 = vunpack.c.l.bf16 %v611
        %v614 = vunpack.c.l.bf16 %v612
        %v615 = vtanh.pop %v613
        %v616 = vtanh.pop %v614
        %v617 = vpack.c.bf16 %v615, %v615
        %v618 = vpack.c.bf16 %v616, %v616
        %v619 = vunpack.c.l.bf16 %v617
        %v620 = vunpack.c.l.bf16 %v618
        %v621 = vmul.f32 %v619, 0.5
        %v622 = vmul.f32 %v620, 0.5
        %v623 = vpack.c.bf16 %v621, %v621
        %v624 = vpack.c.bf16 %v622, %v622
        %v625 = vunpack.c.l.bf16 %v623
        %v626 = vunpack.c.l.bf16 %v624
        %v627 = vadd.f32 %v625, 0.5
        %v628 = vadd.f32 %v626, 0.5
        %v629 = vpack.c.bf16 %v627, %v627
        %v630 = vpack.c.bf16 %v628, %v628
        %v631 = vunpack.c.l.bf16 %v629
        %v632 = vunpack.c.l.bf16 %v630
        %v633 = vunpack.c.l.bf16 %v521
        %v634 = vunpack.c.l.bf16 %v522
        %v635 = vadd.f32 %v631, %v633
        %v636 = vadd.f32 %v632, %v634
        %v637 = vpack.c.bf16 %v636, %v635
        %v638 = vld [vmem:[%s7] sm:$0xf]
        %v639 = vld [vmem:[%s7 + $0x4] sm:$0xf]
        %v640 = vld [vmem:[%s7 + $0x8] sm:$0xf]
        %v641 = vld [vmem:[%s7 + $0xc] sm:$0xf]
        %v642 = vld [vmem:[%s7 + $0x10] sm:$0xf]
        %v643 = vld [vmem:[%s7 + $0x14] sm:$0xf]
        %v644 = vld [vmem:[%s7 + $0x18] sm:$0xf]
        %v645 = vld [vmem:[%s7 + $0x1c] sm:$0xf]
        %v646 = vld [vmem:[%s7 + $0x20] sm:$0xf]
        %v647 = vld [vmem:[%s7 + $0x24] sm:$0xf]
        %v648 = vld [vmem:[%s7 + $0x28] sm:$0xf]
        %v649 = vld [vmem:[%s7 + $0x2c] sm:$0xf]
        %v650 = vld [vmem:[%s7 + $0x30] sm:$0xf]
        %v651 = vld [vmem:[%s7 + $0x34] sm:$0xf]
        %v652 = vld [vmem:[%s7 + $0x38] sm:$0xf]
        %v653 = vld [vmem:[%s7 + $0x3c] sm:$0xf]
        %v654 = vld [vmem:[%s8] sm:$0x1]
        %v656 = vperm.slane %v654, 0
        %v674 = vunpack.c.l.b16 %v638
        %v675 = vunpack.c.l.b16 %v639
        %v676 = vunpack.c.l.b16 %v640
        %v677 = vunpack.c.l.b16 %v641
        %v678 = vunpack.c.l.b16 %v642
        %v679 = vunpack.c.l.b16 %v643
        %v680 = vunpack.c.l.b16 %v644
        %v681 = vunpack.c.l.b16 %v645
        %v682 = vunpack.c.l.b16 %v646
        %v683 = vunpack.c.l.b16 %v647
        %v684 = vunpack.c.l.b16 %v648
        %v685 = vunpack.c.l.b16 %v649
        %v686 = vunpack.c.l.b16 %v650
        %v687 = vunpack.c.l.b16 %v651
        %v688 = vunpack.c.l.b16 %v652
        %v689 = vunpack.c.l.b16 %v653
        %v690 = vpack.c.b16 %v675, %v674
        %v691 = vpack.c.b16 %v677, %v676
        %v692 = vpack.c.b16 %v679, %v678
        %v693 = vpack.c.b16 %v681, %v680
        %v694 = vpack.c.b16 %v683, %v682
        %v695 = vpack.c.b16 %v685, %v684
        %v696 = vpack.c.b16 %v687, %v686
        %v697 = vpack.c.b16 %v689, %v688
        %706 = vmatpush.bf16.msra.mxu0 %v697
        %707 = vmatpush.bf16.msra.mxu0 %v696
        %708 = vmatpush.bf16.msra.mxu0 %v695
        %709 = vmatpush.bf16.msra.mxu0 %v694
        %710 = vmatpush.bf16.msra.mxu0 %v693
        %711 = vmatpush.bf16.msra.mxu0 %v692
        %712 = vmatpush.bf16.msra.mxu0 %v691
        %713 = vmatpush.bf16.msra.mxu0 %v690
        %714 = vmatmul.bf16.gmra.mxu0 %v637
        %v715 = vpop.f32.mrf.mxu0
        %v716 = vadd.f32 %v656, %v715
        %v717 = vpop.f32.mrf.mxu0
        %v718 = vadd.f32 %v656, %v717
        %719 = vdwg.mxu0
        %v720 = vtanh.pop %v716
        %v721 = vtanh.pop %v718
        %v722 = vmul.f32 %v720, 0.5
        %v723 = vmul.f32 %v721, 0.5
        %v724 = vadd.f32 %v722, 0.5
        %v725 = vadd.f32 %v723, 0.5
        %v726 = vsub.f32 1.0, %v724
        %v727 = vsub.f32 1.0, %v725
        %729 = vset.pattern.permute.xlu0 2
        %730 = vperm.xlu0 %729, %v726
        %v731 = vpop.permute.xlu0 %730
        %734 = vset.pattern.permute.xlu0 2
        %735 = vperm.xlu0 %734, %v727
        %v736 = vpop.permute.xlu0 %735
        %v738 = vrcp.pop %v726
        %v739 = vmul.f32 %v726, %v738
        %v740 = vsub.f32 1.0, %v739
        %v741 = vmul.f32 %v738, %v740
        %v742 = vadd.f32 %v738, %v741
        %vm743 = vweird.f32 %v726
        %vm744 = vweird.f32 %v738
        %vm745 = vmor %vm743, %vm744
        %v746 = vsel %vm745, %v738, %v742
        %v747 = vand.u32 2147483647, %v726
        %vm748 = vcmp.eq.f32.partialorder %v747, 8.507059e+37
        %v749 = vand.u32 %v726, 2147483648
        %v750 = vor.u32 1.1754944e-38, %v749
        %v751 = vsel %vm748, %v750, %v746
        %v752 = vmul.f32 %v731, %v751
        %v753 = vrcp.pop %v727
        %v754 = vmul.f32 %v727, %v753
        %v755 = vsub.f32 1.0, %v754
        %v756 = vmul.f32 %v753, %v755
        %v757 = vadd.f32 %v753, %v756
        %vm758 = vweird.f32 %v727
        %vm759 = vweird.f32 %v753
        %vm760 = vmor %vm758, %vm759
        %v761 = vsel %vm760, %v753, %v757
        %v762 = vand.u32 2147483647, %v727
        %vm763 = vcmp.eq.f32.partialorder %v762, 8.507059e+37
        %v764 = vand.u32 %v727, 2147483648
        %v765 = vor.u32 1.1754944e-38, %v764
        %v766 = vsel %vm763, %v765, %v761
        %v767 = vmul.f32 %v736, %v766
        %v768 = vmax.f32 %v752, 0.0001
        %v769 = vmax.f32 %v767, 0.0001
        %v770 = vlog2.pop %v768
        %v771 = vmul.f32 %v770, 0.6931472
        %v772 = vlog2.pop %v769
        %v773 = vmul.f32 %v772, 0.6931472
        %776 = vrot.lane.b32.xlu0 %v771, 4
        %v777 = vpop.permute.xlu0 %776
        %778 = vrot.lane.b32.xlu0 %v773, 4
        %v779 = vpop.permute.xlu0 %778
        %782 = vrot.lane.b32.xlu0 %v771, 3
        %v783 = vpop.permute.xlu0 %782
        %784 = vrot.lane.b32.xlu0 %v773, 3
        %v785 = vpop.permute.xlu0 %784
        %vm788 = vcmask 31744
        %v789 = vsel %vm788, %v724, %v777
        %v790 = vsel %vm788, %v725, %v779
        %vm791 = vcmask 48128
        %v792 = vsel %vm791, %v789, %v783
        %v793 = vsel %vm791, %v790, %v785
        %vm794 = vcmask 56320
        %v795 = vsel %vm794, %v792, 0.0
        %v796 = vsel %vm794, %v793, 0.0
        %vm797 = vcmask 64512
        %798 = vst.msk [vmem:[%s351] sm:$0xff] %vm797, %v795
        %799 = vst.msk [vmem:[%s351 + $0x8] sm:$0xff] %vm797, %v796
        %s800 = smul.u32 2, %s21
        %p801 = scmp.lt.s32.totalorder %s800, 3
        %s802 = scalar_select %p801, %s800, 3
        %s803 = smul.addr %s802, 8
        %s804 = scalar_lea.vmem %s9, %s803
        // Predicated region
        $region61: #{tpu_custom_call.1} parent=55 // pred_check
          %p805 = pneg %p233
        $region62: #{tpu_custom_call.1} parent=55 // pred_check_branch
          %807 = sbr.rel (%p805) target = $region64
        $region63: #{tpu_custom_call.1} parent=55 // pred_region
          %s808 = smul.u32 2, %s21
        $region64: #{tpu_custom_call.1} parent=55 // pred_fallthru
          _
      $region56: #{tpu_custom_call.1} parent=5 // pred_fallthru
        _
      %p809 = scmp.le.s32.totalorder 2, %s16
      // Predicated region
      $region65: #{tpu_custom_call.1} parent=5 // pred_check
        %p810 = pneg %p809
      $region66: #{tpu_custom_call.1} parent=5 // pred_check_branch
        %812 = sbr.rel (%p810) target = $region68
      $region67: #{tpu_custom_call.1} parent=5 // pred_region
        %s813 = ssub.s32 %s16, 2
        // Predicated region
        $region69: #{tpu_custom_call.1} parent=67 // pred_check
          %p814 = pneg %p239
        $region70: #{tpu_custom_call.1} parent=67 // pred_check_branch
          %816 = sbr.rel (%p814) target = $region72
        $region71: #{tpu_custom_call.1} parent=67 // pred_region
          %s817 = smul.u32 2, %s22
          %p818 = scmp.lt.s32.totalorder %s817, 3
          %s819 = scalar_select %p818, %s817, 3
          %s820 = smul.addr %s819, 8
          %s821 = scalar_lea.vmem %s9, %s820
        $region72: #{tpu_custom_call.1} parent=67 // pred_fallthru
          _
      $region68: #{tpu_custom_call.1} parent=5 // pred_fallthru
        _
    $region6: #{tpu_custom_call.1} parent=1 // loop_footer
      %s20 = sadd.s32 1, %s16
    $region7: #{tpu_custom_call.1} parent=1 // loop_footer_branch
      %15 = sbr.rel target = $region3
    $region8: #{tpu_custom_call.1} parent=1 // loop_exit
      _
    %822 = vsyncpa [#allocation3], 1
    %s823 = scalar_lea.sflag [#allocation3], 1
    %824 = vsyncpa %s823, 1

</llo_original>
